<compile_context>
chip_gen: v6e
topology: v6e:2x2x1
jax: 0.10.0
libtpu: 0.0.40
codegen_flags: <defaults>
</compile_context>

<pallas_src>
import functools

import jax
import jax.numpy as jnp
from jax import lax
from jax.experimental import pallas as pl
from jax.experimental.pallas import tpu as pltpu

BN_EPS = 1e-5        # PyTorch BatchNorm1d default eps
L2_EPS = 1e-12       # PyTorch F.normalize default eps

_VMEM_BUDGET_BYTES = 24 * 1024 * 1024   # stay well under v7x's 32 MiB scoped default
_VMEM_LIMIT_BYTES = 32 * 1024 * 1024


def _round_up(v, m):
    return (v + m - 1) // m * m


def _choose_tiles(N, K, F):
    """Pick (tm, tk) that feed the MXU and fit VMEM on all TPU generations."""
    # Row tile: cover the whole (padded) batch up to 512 rows; for big batches
    # use 256 so the parallel axis has >= 2 steps (feeds both v7x TensorCores)
    # and padding waste stays bounded.
    if N <= 512:
        tm = _round_up(max(N, 8), 8)
    else:
        tm = 256
    # Reduction tile: whole K when it fits (single K step -> the fused weight's
    # block index is constant, so it is DMA'd once and stays VMEM-resident),
    # otherwise stream 512-deep slabs.
    if K <= 2048:
        tk = _round_up(max(K, 128), 128)
    else:
        tk = 512

    def vmem_bytes(tm_, tk_):
        return 4 * (2 * tm_ * tk_      # double-buffered x tile
                    + 2 * tk_ * F      # double-buffered fused-weight tile
                    + 2 * tm_ * F      # double-buffered output tile
                    + tm_ * F          # f32 accumulator scratch
                    + 2 * F)           # fused bias

    # Shrink the row tile (keeping it a multiple of 8) if the estimate is over
    # budget; reduction/feature dims are left MXU-friendly.
    while vmem_bytes(tm, tk) > _VMEM_BUDGET_BYTES and tm > 16:
        tm = max(16, (tm // 2) // 8 * 8)
    return tm, tk


def _avgpool_kernel(x_ref, w_ref, b_ref, o_ref, acc_ref):
    """Fused (Linear + BN(eval)) matmul + L2-normalize.

    Grid = (N_pad // tm, K_pad // tk); K is the reduction axis (last). The
    weight and bias already have BatchNorm folded in, so the epilogue is just
    bias-add + row-wise L2 normalization (single rsqrt on the EUP).
    """
    k = pl.program_id(1)

    @pl.when(k == 0)
    def _():
        acc_ref[...] = jnp.zeros_like(acc_ref)

    acc_ref[...] += jnp.dot(x_ref[...], w_ref[...],
                            preferred_element_type=jnp.float32)

    @pl.when(k == pl.num_programs(1) - 1)
    def _():
        y = acc_ref[...] + b_ref[...]
        ss = jnp.sum(y * y, axis=-1, keepdims=True)
        # 1 / max(||y||, L2_EPS) == rsqrt(max(||y||^2, L2_EPS^2))
        inv_norm = lax.rsqrt(jnp.maximum(ss, L2_EPS * L2_EPS))
        o_ref[...] = (y * inv_norm).astype(o_ref.dtype)


@functools.partial(jax.jit, static_argnames=("tm", "tk"))
def _fused_forward(x, w, bias, gamma, beta, running_mean, running_var, *, tm, tk):
    N, K = x.shape
    F = w.shape[0]

    # ---- Fold BatchNorm(eval) + bias into the weight / a single bias ----
    inv_std = lax.rsqrt(running_var.astype(jnp.float32) + BN_EPS)
    scale = gamma.astype(jnp.float32) * inv_std                        # (F,)
    w_fused = (w.T.astype(jnp.float32) * scale[None, :])               # (K, F)
    b_fused = ((bias.astype(jnp.float32) - running_mean.astype(jnp.float32))
               * scale + beta.astype(jnp.float32)).reshape(1, F)

    # ---- Pad to tile multiples (zero K-columns contribute 0 to the dot) ----
    N_pad = _round_up(N, tm)
    K_pad = _round_up(K, tk)
    x_p = x
    if (N_pad, K_pad) != (N, K):
        x_p = jnp.pad(x, ((0, N_pad - N), (0, K_pad - K)))
    w_p = w_fused
    if K_pad != K:
        w_p = jnp.pad(w_fused, ((0, K_pad - K), (0, 0)))

    out = pl.pallas_call(
        _avgpool_kernel,
        out_shape=jax.ShapeDtypeStruct((N_pad, F), x.dtype),
        grid_spec=pltpu.PrefetchScalarGridSpec(
            num_scalar_prefetch=0,
            grid=(N_pad // tm, K_pad // tk),
            in_specs=[
                pl.BlockSpec((tm, tk), lambda i, k: (i, k)),   # x tile
                pl.BlockSpec((tk, F), lambda i, k: (k, 0)),    # fused W^T tile
                pl.BlockSpec((1, F), lambda i, k: (0, 0)),     # fused bias
            ],
            out_specs=pl.BlockSpec((tm, F), lambda i, k: (i, 0)),
            scratch_shapes=[pltpu.VMEM((tm, F), jnp.float32)],
        ),
        compiler_params=pltpu.CompilerParams(
            dimension_semantics=("parallel", "arbitrary"),
            vmem_limit_bytes=_VMEM_LIMIT_BYTES),
    )(x_p, w_p, b_fused)

    return out[:N]


def avg_pooling_forward(x, w, bias, gamma, beta, running_mean, running_var):
    """Returns (net, eval_feas) matching AvgPooling.forward in eval mode.

    `w` is in PyTorch nn.Linear layout: [embeding_fea_size, input_feature_size].
    """
    N, K = x.shape
    F = w.shape[0]
    tm, tk = _choose_tiles(N, K, F)
    net = _fused_forward(x, w, bias, gamma, beta, running_mean, running_var,
                         tm=tm, tk=tk)
    eval_feas = x  # passthrough, as in the PyTorch module
    return net, eval_feas


def init_params(key, input_feature_size, embeding_fea_size):
    """Deterministic parameter init matching the module's __init__."""
    # kaiming_normal_(mode='fan_out') on weight of shape [out, in]:
    # std = sqrt(2 / fan_out) = sqrt(2 / embeding_fea_size)
    std = (2.0 / embeding_fea_size) ** 0.5
    w = std * jax.random.normal(key, (embeding_fea_size, input_feature_size),
                                dtype=jnp.float32)
    bias = jnp.zeros((embeding_fea_size,), jnp.float32)          # constant_(0)
    gamma = jnp.ones((embeding_fea_size,), jnp.float32)          # constant_(1)
    beta = jnp.zeros((embeding_fea_size,), jnp.float32)          # constant_(0)
    running_mean = jnp.zeros((embeding_fea_size,), jnp.float32)  # BN default
    running_var = jnp.ones((embeding_fea_size,), jnp.float32)    # BN default
    return w, bias, gamma, beta, running_mean, running_var


if __name__ == "__main__":
    key = jax.random.PRNGKey(0)
    k_w, k_x, k_bn = jax.random.split(key, 3)

    # Small, deliberately non-tile-aligned shapes to exercise the padding path.
    N = 10                      # batch
    input_feature_size = 200    # F_in
    embeding_fea_size = 128     # F_out (small stand-in for default 1024)

    w, bias, gamma, beta, rmean, rvar = init_params(
        k_w, input_feature_size, embeding_fea_size)
    # Non-trivial BN running stats so the affine fold is actually exercised.
    rmean = 0.1 * jax.random.normal(k_bn, (embeding_fea_size,), jnp.float32)
    rvar = 1.0 + 0.05 * jnp.abs(jax.random.normal(k_bn, (embeding_fea_size,),
                                                  jnp.float32))
    x = jax.random.normal(k_x, (N, input_feature_size), dtype=jnp.float32)

    net, eval_feas = avg_pooling_forward(x, w, bias, gamma, beta, rmean, rvar)
    jax.block_until_ready((net, eval_feas))

    # Pure-JAX reference check.
    y_ref = x @ w.T + bias
    y_ref = (y_ref - rmean) * jax.lax.rsqrt(rvar + BN_EPS) * gamma + beta
    nrm = jnp.maximum(jnp.linalg.norm(y_ref, axis=1, keepdims=True), L2_EPS)
    y_ref = y_ref / nrm
    assert net.shape == (N, embeding_fea_size)
    assert jnp.allclose(net, y_ref, atol=2e-5, rtol=2e-5), "mismatch vs reference"
    assert jnp.array_equal(eval_feas, x)

    print("KERNEL_OK")
</pallas_src>

<mosaic_0001>
module attributes {stable_mosaic.version = 11 : i64} {
  func.func @_avgpool_kernel(%arg0: i32, %arg1: i32, %arg2: memref<16x256xf32, #tpu.memory_space<vmem>>, %arg3: memref<256x128xf32, #tpu.memory_space<vmem>>, %arg4: memref<1x128xf32, #tpu.memory_space<vmem>>, %arg5: memref<16x128xf32, #tpu.memory_space<vmem>>, %arg6: memref<16x128xf32, #tpu.memory_space<vmem>>) attributes {dimension_semantics = [#tpu.dimension_semantics<parallel>, #tpu.dimension_semantics<arbitrary>], iteration_bounds = array<i64: 1, 1>, scalar_prefetch = 0 : i64, scratch_operands = 1 : i64, tpu.core_type = #tpu.core_type<tc>, window_params = [{transform_indices = @transform_0, window_bounds = array<i64: 16, 256>}, {transform_indices = @transform_1, window_bounds = array<i64: 256, 128>}, {pipeline_mode = #tpu.pipeline_mode<synchronous>, transform_indices = @transform_2, window_bounds = array<i64: 1, 128>}, {transform_indices = @transform_3, window_bounds = array<i64: 16, 128>}]} {
    %c0_i32 = arith.constant 0 : i32
    %0 = arith.cmpi eq, %arg1, %c0_i32 : i32
    %1 = arith.extui %0 : i1 to i32
    %c0_i32_0 = arith.constant 0 : i32
    %2 = arith.cmpi ne, %1, %c0_i32_0 : i32
    scf.if %2 {
      %cst_10 = arith.constant 0.000000e+00 : f32
      %12 = vector.broadcast %cst_10 : f32 to vector<16x128xf32>
      %c0_11 = arith.constant 0 : index
      %c0_12 = arith.constant 0 : index
      %13 = vector.load %arg6[%c0_11, %c0_12] : memref<16x128xf32, #tpu.memory_space<vmem>>, vector<16x128xf32>
      tpu.vector_store %arg6[%c0_11, %c0_12], %12 {strides = array<i32>} : memref<16x128xf32, #tpu.memory_space<vmem>>, vector<16x128xf32>,
    } else {
    }
    %c0 = arith.constant 0 : index
    %c0_1 = arith.constant 0 : index
    %3 = vector.load %arg6[%c0, %c0_1] : memref<16x128xf32, #tpu.memory_space<vmem>>, vector<16x128xf32>
    %c0_2 = arith.constant 0 : index
    %c0_3 = arith.constant 0 : index
    %4 = vector.load %arg2[%c0_2, %c0_3] : memref<16x256xf32, #tpu.memory_space<vmem>>, vector<16x256xf32>
    %c0_4 = arith.constant 0 : index
    %c0_5 = arith.constant 0 : index
    %5 = vector.load %arg3[%c0_4, %c0_5] : memref<256x128xf32, #tpu.memory_space<vmem>>, vector<256x128xf32>
    %cst = arith.constant dense<0.000000e+00> : vector<16x128xf32>
    %6 = tpu.matmul %4, %5, %cst {dimension_numbers = #tpu.dot_dimension_numbers<[1], [0], [0], [1], [0, 0, 1, 1], [], []>} : vector<16x256xf32>, vector<256x128xf32>, vector<16x128xf32> -> vector<16x128xf32>
    %7 = arith.addf %3, %6 : vector<16x128xf32>
    %c0_6 = arith.constant 0 : index
    %c0_7 = arith.constant 0 : index
    %8 = vector.load %arg6[%c0_6, %c0_7] : memref<16x128xf32, #tpu.memory_space<vmem>>, vector<16x128xf32>
    tpu.vector_store %arg6[%c0_6, %c0_7], %7 {strides = array<i32>} : memref<16x128xf32, #tpu.memory_space<vmem>>, vector<16x128xf32>,
    %c0_i32_8 = arith.constant 0 : i32
    %9 = arith.cmpi eq, %arg1, %c0_i32_8 : i32
    %10 = arith.extui %9 : i1 to i32
    %c0_i32_9 = arith.constant 0 : i32
    %11 = arith.cmpi ne, %10, %c0_i32_9 : i32
    scf.if %11 {
      %c0_10 = arith.constant 0 : index
      %c0_11 = arith.constant 0 : index
      %12 = vector.load %arg6[%c0_10, %c0_11] : memref<16x128xf32, #tpu.memory_space<vmem>>, vector<16x128xf32>
      %c0_12 = arith.constant 0 : index
      %c0_13 = arith.constant 0 : index
      %13 = vector.load %arg4[%c0_12, %c0_13] : memref<1x128xf32, #tpu.memory_space<vmem>>, vector<1x128xf32>
      %14 = vector.broadcast %13 : vector<1x128xf32> to vector<16x128xf32>
      %15 = arith.addf %12, %14 : vector<16x128xf32>
      %16 = arith.mulf %15, %15 : vector<16x128xf32>
      %cst_14 = arith.constant dense<0.000000e+00> : vector<16xf32>
      %17 = vector.multi_reduction <add>, %16, %cst_14 [1] : vector<16x128xf32> to vector<16xf32>
      %18 = vector.shape_cast %17 : vector<16xf32> to vector<16x1xf32>
      %cst_15 = arith.constant 1.000000e-24 : f32
      %19 = vector.broadcast %cst_15 : f32 to vector<16x1xf32>
      %20 = arith.maximumf %18, %19 : vector<16x1xf32>
      %21 = math.rsqrt %20 : vector<16x1xf32>
      %22 = vector.broadcast %21 : vector<16x1xf32> to vector<16x128xf32>
      %23 = arith.mulf %15, %22 : vector<16x128xf32>
      %c0_16 = arith.constant 0 : index
      %c0_17 = arith.constant 0 : index
      %24 = vector.load %arg5[%c0_16, %c0_17] : memref<16x128xf32, #tpu.memory_space<vmem>>, vector<16x128xf32>
      tpu.vector_store %arg5[%c0_16, %c0_17], %23 {strides = array<i32>} : memref<16x128xf32, #tpu.memory_space<vmem>>, vector<16x128xf32>,
    } else {
    }
    return
  }
  func.func @transform_0(%arg0: i32, %arg1: i32) -> (i32, i32) {
    %c0_i32 = arith.constant 0 : i32
    return %arg0, %arg1 : i32, i32
  }
  func.func @transform_1(%arg0: i32, %arg1: i32) -> (i32, i32) {
    %c0_i32 = arith.constant 0 : i32
    %c0_i32_0 = arith.constant 0 : i32
    return %arg1, %c0_i32 : i32, i32
  }
  func.func @transform_2(%arg0: i32, %arg1: i32) -> (i32, i32) {
    %c0_i32 = arith.constant 0 : i32
    %c0_i32_0 = arith.constant 0 : i32
    %c0_i32_1 = arith.constant 0 : i32
    return %c0_i32, %c0_i32_0 : i32, i32
  }
  func.func @transform_3(%arg0: i32, %arg1: i32) -> (i32, i32) {
    %c0_i32 = arith.constant 0 : i32
    %c0_i32_0 = arith.constant 0 : i32
    return %arg0, %c0_i32 : i32, i32
  }
}

</mosaic_0001>

<llo_original>
// kernel: _fused_forward.1
$region0: #{_fused_forward.1}
  #allocation0 [shape = 'u32[]', space=smem, size = 0x4, offset = 0x4, fixed_abs, tag = 'smem constant byte address 0x4 - core index']
  #allocation1 [shape = 'u32[144,128]{1,0:T(1,128)}', space=vmem, size = 0x12000, scoped, tag = 'internal scratch']
  #allocation2 [shape = 'f32[16,128]{1,0:T(8,128)}', space=vmem, size = 0x2000, scoped, tag = 'scratch operand']
  %s0 = inlined_call_operand.vmem [shape: f32[16,256], index: 0, kind: input, shape index: {}]
  %s1 = inlined_call_operand.vmem [shape: f32[256,128], index: 1, kind: input, shape index: {}]
  %s2 = inlined_call_operand.vmem [shape: f32[1,128], index: 2, kind: input, shape index: {}]
  %s3 = inlined_call_operand.hbm [shape: f32[16,128], index: 3, kind: output, shape index: {}]
  %s4 = sld [smem:[#allocation0]]
  $region30: #{_fused_forward.1} parent=0
    _
  %s6 = ssub.s32 1, %s4
  %s7 = scalar_select 0, %s6, %s4
  $region1: #{_fused_forward.1} parent=0
    #allocation3 [shape = 'u8[8192]{0}', space=vmem, size = 0x2000, scoped, tag = 'output window, operand 0, single buffered']
    #allocation4 [shape = 's32[1]{0}', space=sflag, size = 0x4, scoped, tag = 'scoped memory for _fused_forward.1']
    %8 = vsyncpa [#allocation4], 0
    // Predicated region
    $region2: #{_fused_forward.1} parent=1 // pred_check
      _
    $region3: #{_fused_forward.1} parent=1 // pred_check_branch
      %10 = sbr.rel (0) target = $region5
    $region4: #{_fused_forward.1} parent=1 // pred_region
      _
    $region5: #{_fused_forward.1} parent=1 // pred_fallthru
      _
    // Predicated region
    $region6: #{_fused_forward.1} parent=1 // pred_check
      _
    $region7: #{_fused_forward.1} parent=1 // pred_check_branch
      %12 = sbr.rel (0) target = $region9
    $region8: #{_fused_forward.1} parent=1 // pred_region
      _
    $region9: #{_fused_forward.1} parent=1 // pred_fallthru
      _
    // Predicated region
    $region10: #{_fused_forward.1} parent=1 // pred_check
      _
    $region11: #{_fused_forward.1} parent=1 // pred_check_branch
      %14 = sbr.rel (0) target = $region13
    $region12: #{_fused_forward.1} parent=1 // pred_region
      _
    $region13: #{_fused_forward.1} parent=1 // pred_fallthru
      _
    %p15 = scmp.eq.s32.totalorder 0, 0
    // Predicated region
    $region14: #{_fused_forward.1} parent=1 // pred_check
      %p16 = pneg %p15
    $region15: #{_fused_forward.1} parent=1 // pred_check_branch
      %18 = sbr.rel (%p16) target = $region17
    $region16: #{_fused_forward.1} parent=1 // pred_region
      %19 = vst [vmem:[#allocation2] sm:$0xff] 0.0
      %20 = vst [vmem:[#allocation2 + $0x8] sm:$0xff] 0.0
    $region17: #{_fused_forward.1} parent=1 // pred_fallthru
      _
    %v21 = vld [vmem:[#allocation2] sm:$0xff]
    %v22 = vld [vmem:[#allocation2 + $0x8] sm:$0xff]
    %v23 = vld [vmem:[%s0] sm:$0xff]
    %v24 = vld [vmem:[%s0 + $0x8] sm:$0xff]
    %v25 = vld [vmem:[%s0 + $0x10] sm:$0xff]
    %v26 = vld [vmem:[%s0 + $0x18] sm:$0xff]
    %v27 = vld [vmem:[%s1] sm:$0xff]
    %v28 = vld [vmem:[%s1 + $0x8] sm:$0xff]
    %v29 = vld [vmem:[%s1 + $0x10] sm:$0xff]
    %v30 = vld [vmem:[%s1 + $0x18] sm:$0xff]
    %v31 = vld [vmem:[%s1 + $0x20] sm:$0xff]
    %v32 = vld [vmem:[%s1 + $0x28] sm:$0xff]
    %v33 = vld [vmem:[%s1 + $0x30] sm:$0xff]
    %v34 = vld [vmem:[%s1 + $0x38] sm:$0xff]
    %v35 = vld [vmem:[%s1 + $0x40] sm:$0xff]
    %v36 = vld [vmem:[%s1 + $0x48] sm:$0xff]
    %v37 = vld [vmem:[%s1 + $0x50] sm:$0xff]
    %v38 = vld [vmem:[%s1 + $0x58] sm:$0xff]
    %v39 = vld [vmem:[%s1 + $0x60] sm:$0xff]
    %v40 = vld [vmem:[%s1 + $0x68] sm:$0xff]
    %v41 = vld [vmem:[%s1 + $0x70] sm:$0xff]
    %v42 = vld [vmem:[%s1 + $0x78] sm:$0xff]
    %v43 = vld [vmem:[%s1 + $0x80] sm:$0xff]
    %v44 = vld [vmem:[%s1 + $0x88] sm:$0xff]
    %v45 = vld [vmem:[%s1 + $0x90] sm:$0xff]
    %v46 = vld [vmem:[%s1 + $0x98] sm:$0xff]
    %v47 = vld [vmem:[%s1 + $0xa0] sm:$0xff]
    %v48 = vld [vmem:[%s1 + $0xa8] sm:$0xff]
    %v49 = vld [vmem:[%s1 + $0xb0] sm:$0xff]
    %v50 = vld [vmem:[%s1 + $0xb8] sm:$0xff]
    %v51 = vld [vmem:[%s1 + $0xc0] sm:$0xff]
    %v52 = vld [vmem:[%s1 + $0xc8] sm:$0xff]
    %v53 = vld [vmem:[%s1 + $0xd0] sm:$0xff]
    %v54 = vld [vmem:[%s1 + $0xd8] sm:$0xff]
    %v55 = vld [vmem:[%s1 + $0xe0] sm:$0xff]
    %v56 = vld [vmem:[%s1 + $0xe8] sm:$0xff]
    %v57 = vld [vmem:[%s1 + $0xf0] sm:$0xff]
    %v58 = vld [vmem:[%s1 + $0xf8] sm:$0xff]
    %59 = vmatprep.subr.mxu0 0.0
    %60 = vmatpush1.msra.mxu0 %v42
    %61 = vmatprep.subr.mxu0 0.0
    %62 = vmatpush1.msra.mxu0 %v41
    %63 = vmatprep.subr.mxu0 0.0
    %64 = vmatpush1.msra.mxu0 %v40
    %65 = vmatprep.subr.mxu0 0.0
    %66 = vmatpush1.msra.mxu0 %v39
    %67 = vmatprep.subr.mxu0 0.0
    %68 = vmatpush1.msra.mxu0 %v38
    %69 = vmatprep.subr.mxu0 0.0
    %70 = vmatpush1.msra.mxu0 %v37
    %71 = vmatprep.subr.mxu0 0.0
    %72 = vmatpush1.msra.mxu0 %v36
    %73 = vmatprep.subr.mxu0 0.0
    %74 = vmatpush1.msra.mxu0 %v35
    %75 = vmatprep.subr.mxu0 0.0
    %76 = vmatpush1.msra.mxu0 %v34
    %77 = vmatprep.subr.mxu0 0.0
    %78 = vmatpush1.msra.mxu0 %v33
    %79 = vmatprep.subr.mxu0 0.0
    %80 = vmatpush1.msra.mxu0 %v32
    %81 = vmatprep.subr.mxu0 0.0
    %82 = vmatpush1.msra.mxu0 %v31
    %83 = vmatprep.subr.mxu0 0.0
    %84 = vmatpush1.msra.mxu0 %v30
    %85 = vmatprep.subr.mxu0 0.0
    %86 = vmatpush1.msra.mxu0 %v29
    %87 = vmatprep.subr.mxu0 0.0
    %88 = vmatpush1.msra.mxu0 %v28
    %89 = vmatprep.subr.mxu0 0.0
    %90 = vmatpush1.msra.mxu0 %v27
    %91 = vmatprep.subr.mxu0 0.0
    %92 = vmatpush2.msra.mxu0 %v58
    %93 = vmatprep.subr.mxu0 0.0
    %94 = vmatpush2.msra.mxu0 %v57
    %95 = vmatprep.subr.mxu0 0.0
    %96 = vmatpush2.msra.mxu0 %v56
    %97 = vmatprep.subr.mxu0 0.0
    %98 = vmatpush2.msra.mxu0 %v55
    %99 = vmatprep.subr.mxu0 0.0
    %100 = vmatpush2.msra.mxu0 %v54
    %101 = vmatprep.subr.mxu0 0.0
    %102 = vmatpush2.msra.mxu0 %v53
    %103 = vmatprep.subr.mxu0 0.0
    %104 = vmatpush2.msra.mxu0 %v52
    %105 = vmatprep.subr.mxu0 0.0
    %106 = vmatpush2.msra.mxu0 %v51
    %107 = vmatprep.subr.mxu0 0.0
    %108 = vmatpush2.msra.mxu0 %v50
    %109 = vmatprep.subr.mxu0 0.0
    %110 = vmatpush2.msra.mxu0 %v49
    %111 = vmatprep.subr.mxu0 0.0
    %112 = vmatpush2.msra.mxu0 %v48
    %113 = vmatprep.subr.mxu0 0.0
    %114 = vmatpush2.msra.mxu0 %v47
    %115 = vmatprep.subr.mxu0 0.0
    %116 = vmatpush2.msra.mxu0 %v46
    %117 = vmatprep.subr.mxu0 0.0
    %118 = vmatpush2.msra.mxu0 %v45
    %119 = vmatprep.subr.mxu0 0.0
    %120 = vmatpush2.msra.mxu0 %v44
    %121 = vmatprep.subr.mxu0 0.0
    %122 = vmatpush2.msra.mxu0 %v43
    %123 = vmatprep.mubr.f32.mxu0 %v24
    %124 = vmatmul.mubr.f32.gmra.mxu0 %v23
    %v125 = vpop.f32.mrf.mxu0
    %v126 = vadd.f32 0.0, %v125
    %v127 = vpop.f32.mrf.mxu0
    %128 = vmatprep.mubr.f32.mxu0 %v26
    %129 = vmatmul.mubr.f32.gmra.mxu0 %v25
    %v130 = vpop.f32.mrf.mxu0
    %v131 = vadd.f32 0.0, %v130
    %v132 = vpop.f32.mrf.mxu0
    %133 = vdwg.mxu0
    %v134 = vadd.f32 %v21, %v126
    %v135 = vadd.f32 %v22, %v131
    %136 = vst [vmem:[#allocation2] sm:$0xff] %v134
    %137 = vst [vmem:[#allocation2 + $0x8] sm:$0xff] %v135
    // Predicated region
    $region18: #{_fused_forward.1} parent=1 // pred_check
      %p138 = pneg %p15
    $region19: #{_fused_forward.1} parent=1 // pred_check_branch
      %140 = sbr.rel (%p138) target = $region21
    $region20: #{_fused_forward.1} parent=1 // pred_region
      %v141 = vld [vmem:[#allocation2] sm:$0xff]
      %v142 = vld [vmem:[#allocation2 + $0x8] sm:$0xff]
      %v143 = vld [vmem:[%s2] sm:$0x1]
      %v145 = vlaneseq
      %v146 = vshrl.u32 %v145, 7
      %v147 = vsub.s32 0, %v146
      %v148 = vrot.slane %v143, %v147
      %v150 = vadd.f32 %v141, %v148
      %v151 = vadd.f32 %v142, %v148
      %v152 = vmul.f32 %v150, %v150
      %v153 = vmul.f32 %v151, %v151
      %154 = vadd.xlane.f32.xlu0 %v152
      %v155 = vpop.xlane.xlu0 %154
      %156 = vadd.xlane.f32.xlu0 %v153
      %v157 = vpop.xlane.xlu0 %156
      %v158 = vmax.f32 %v155, 1e-24
      %v159 = vmax.f32 %v157, 1e-24
      %v160 = vrsqrt.pop %v158
      %v161 = vrsqrt.pop %v159
      %v162 = vmul.f32 %v150, %v160
      %v163 = vmul.f32 %v151, %v161
      %164 = vst [vmem:[#allocation3] sm:$0xff] %v162
      %165 = vst [vmem:[#allocation3 + $0x8] sm:$0xff] %v163
    $region21: #{_fused_forward.1} parent=1 // pred_fallthru
      _
    // Predicated region
    $region22: #{_fused_forward.1} parent=1 // pred_check
      _
    $region23: #{_fused_forward.1} parent=1 // pred_check_branch
      %167 = sbr.rel (0) target = $region25
    $region24: #{_fused_forward.1} parent=1 // pred_region
      %s169 = ssub.s32 256, 256
      %170 = vsyncadd [#allocation4], %s169
      %s171 = sshll.u32 [#allocation3], 4
      %s172 = int_to_ptr.vmem [resolvable:$true] %s171
      %177 = dma.vmem_to_hbm [thread:$0]  %s172, 256, %s3, [#allocation4], 128, 128, 8
    $region25: #{_fused_forward.1} parent=1 // pred_fallthru
      _
    // Predicated region
    $region26: #{_fused_forward.1} parent=1 // pred_check
      _
    $region27: #{_fused_forward.1} parent=1 // pred_check_branch
      %179 = sbr.rel (0) target = $region29
    $region28: #{_fused_forward.1} parent=1 // pred_region
      %180 = dma.done [#allocation4], 256
    $region29: #{_fused_forward.1} parent=1 // pred_fallthru
      _
    %181 = vsyncpa [#allocation4], 1

</llo_original>
